<compile_context>
chip_gen: v5e
topology: v5e:2x2
jax: 0.10.0
libtpu: 0.0.40
codegen_flags: <defaults>
</compile_context>

<pallas_src>
import functools
import math

import jax
import jax.numpy as jnp
from jax import lax
from jax.experimental import pallas as pl
from jax.experimental.pallas import tpu as pltpu


# ---------------------------------------------------------------------------
# Per-generation VMEM budget
# ---------------------------------------------------------------------------
@functools.lru_cache(maxsize=None)
def _vmem_limit_bytes() -> int:
    """~half of physical VMEM (64 MiB on v5e/v6e, 32 MiB on v7x)."""
    mib = 1024 * 1024
    try:
        cap = int(pltpu.get_tpu_info().vmem_capacity_bytes)
    except Exception:           # fallback if the query is unavailable
        cap = 128 * mib
    return max(32 * mib, min(cap // 2, 96 * mib))


# ---------------------------------------------------------------------------
# pltpu.roll sign-convention probe (one-time, one-vreg)
# ---------------------------------------------------------------------------
@functools.lru_cache(maxsize=None)
def _roll_matches_jnp() -> bool:
    """True iff pltpu.roll(x, s, axis) == jnp.roll(x, s, axis).

    Pins the rotate direction so the conv kernels stay correct across
    jax/Mosaic versions.  Must be warmed outside any trace; prep_params() does.
    """
    def kernel(x_ref, o_ref):
        o_ref[...] = pltpu.roll(x_ref[...], 1, 1)

    x = lax.broadcasted_iota(jnp.int32, (8, 128), 1)
    out = pl.pallas_call(
        kernel, out_shape=jax.ShapeDtypeStruct((8, 128), jnp.int32))(x)
    return bool(out[0, 1] == 0)  # jnp.roll(iota, 1, axis=1)[0, 1] == 0


# ---------------------------------------------------------------------------
# In-kernel helpers (values live in the lane-dense (C, H*W) layout)
# ---------------------------------------------------------------------------
def _leaky_relu(x, slope):
    return jnp.where(x >= 0, x, slope * x)


def _shift_lanes(v, off):
    """s[:, p] = v[:, (p + off) % n] (cyclic XLU rotate; wrapped lanes are
    zeroed by the caller's boundary masks)."""
    n = v.shape[-1]
    k = off % n
    if k == 0:
        return v
    shift = (-k) % n if _roll_matches_jnp() else k
    return pltpu.roll(v, shift, 1)


def _make_edge_masks(K, H, W):
    """K column masks (for the dx input rolls) and K row masks (for the dy
    output shifts), each (1, H*W) bool.  Built ONCE per kernel invocation and
    each applied exactly once per dx / per dy (vs K*K selects before)."""
    HW = H * W
    R = K // 2
    pos = lax.broadcasted_iota(jnp.int32, (1, HW), 1)
    col = pos % W
    row = pos // W
    col_masks, row_masks = [], []
    for k in range(K):
        d = k - R
        if d < 0:
            col_masks.append(col >= -d)
            row_masks.append(row >= -d)
        elif d > 0:
            col_masks.append(col < W - d)
            row_masks.append(row < H - d)
        else:
            col_masks.append(None)
            row_masks.append(None)
    return col_masks, row_masks


def _conv2d_same(x, get_w, b, *, K, W, col_masks, row_masks):
    """'same' KxK stride-1 conv + bias in the lane-dense (Cin, H*W) layout.

    x        : (Cin, H*W) f32 value.
    get_w(k) : (Cout, K*Cin) bf16 weight slice for tap-row k (ky = k - K//2).
    b        : (Cout, 1) f32 bias.

    Only K column (dx) lane-rolls of the input are issued, reused across every
    tap row; K accumulating MXU matmuls (contraction dim K*Cin, f32 accum);
    the vertical (dy) offsets are applied to the (Cout, H*W) partial outputs.
    Total XLU rolls: 2K-1 per conv instead of K*K, no full im2col matrix.
    """
    R = K // 2
    # K dx-shifted, column-masked pieces -> one (K*Cin, H*W) bf16 matrix.
    pieces = []
    for kx in range(K):
        s = _shift_lanes(x, kx - R)
        m = col_masks[kx]
        if m is not None:
            s = jnp.where(m, s, 0.0)
        pieces.append(s)
    g = jnp.concatenate(pieces, axis=0).astype(jnp.bfloat16)

    acc = None
    for ky in range(K):
        dy = ky - R
        y = jnp.dot(get_w(ky), g, preferred_element_type=jnp.float32)
        y = _shift_lanes(y, dy * W)
        m = row_masks[ky]
        if m is not None:
            y = jnp.where(m, y, 0.0)
        acc = y if acc is None else acc + y
    return acc + b


# ---------------------------------------------------------------------------
# Kernels
# ---------------------------------------------------------------------------
def _conv_block_kernel(x_ref, w_ref, b_ref, o_ref, *, K, H, W, slope):
    """One batch element: KxK stride-1 'same' conv + bias + LeakyReLU."""
    col_masks, row_masks = _make_edge_masks(K, H, W)
    y = _conv2d_same(x_ref[0], lambda ky: w_ref[ky], b_ref[...],
                     K=K, W=W, col_masks=col_masks, row_masks=row_masks)
    o_ref[0] = _leaky_relu(y, slope).astype(o_ref.dtype)


def _resblock_kernel(x_ref, w_ref, b_ref, o_ref, *, H, W, slope):
    """Grid step (n, r): applies ResBlock r to the VMEM-resident activation.

    The output block index is constant across r, so the activation stays in
    VMEM for the whole resblock axis; only this resblock's weights are DMA'd.
    """
    @pl.when(pl.program_id(1) == 0)
    def _():
        o_ref[...] = x_ref[...]

    col_masks, row_masks = _make_edge_masks(3, H, W)
    h = o_ref[0]
    y = _leaky_relu(
        _conv2d_same(h, lambda ky: w_ref[0, 0, ky], b_ref[0, 0],
                     K=3, W=W, col_masks=col_masks, row_masks=row_masks),
        slope)
    y = _leaky_relu(
        _conv2d_same(y, lambda ky: w_ref[0, 1, ky], b_ref[0, 1],
                     K=3, W=W, col_masks=col_masks, row_masks=row_masks),
        slope)
    o_ref[0] = h + y                                   # residual add


# ---------------------------------------------------------------------------
# pallas_call wrappers
# ---------------------------------------------------------------------------
def _conv_block_call(x, w, b, *, K, H, W):
    """x: (N, Cin, H*W) f32;  w: (K, Cout, K*Cin) bf16;  b: (Cout, 1) f32."""
    N, Cin, HW = x.shape
    Kw, Cout, KC = w.shape
    assert Kw == K and KC == K * Cin and HW == H * W
    kernel = functools.partial(_conv_block_kernel, K=K, H=H, W=W, slope=0.2)
    return pl.pallas_call(
        kernel,
        out_shape=jax.ShapeDtypeStruct((N, Cout, HW), x.dtype),
        grid_spec=pltpu.PrefetchScalarGridSpec(
            num_scalar_prefetch=0,
            grid=(N,),
            in_specs=[
                pl.BlockSpec((1, Cin, HW), lambda n: (n, 0, 0)),
                pl.BlockSpec((K, Cout, KC), lambda n: (0, 0, 0)),
                pl.BlockSpec((Cout, 1), lambda n: (0, 0)),
            ],
            out_specs=pl.BlockSpec((1, Cout, HW), lambda n: (n, 0, 0)),
        ),
        compiler_params=pltpu.CompilerParams(
            dimension_semantics=("parallel",),
            vmem_limit_bytes=_vmem_limit_bytes()),
    )(x, w, b)


def _resblocks_call(x, w_stack, b_stack, *, H, W):
    """x: (N, C, H*W) f32;  w_stack: (n_res, 2, 3, C, 3C) bf16;
    b_stack: (n_res, 2, C, 1) f32."""
    N, C, HW = x.shape
    n_res = w_stack.shape[0]
    kernel = functools.partial(_resblock_kernel, H=H, W=W, slope=0.2)
    return pl.pallas_call(
        kernel,
        out_shape=jax.ShapeDtypeStruct((N, C, HW), x.dtype),
        grid_spec=pltpu.PrefetchScalarGridSpec(
            num_scalar_prefetch=0,
            grid=(N, n_res),
            in_specs=[
                pl.BlockSpec((1, C, HW), lambda n, r: (n, 0, 0)),
                pl.BlockSpec((1, 2, 3, C, 3 * C),
                             lambda n, r: (r, 0, 0, 0, 0)),
                pl.BlockSpec((1, 2, C, 1), lambda n, r: (r, 0, 0, 0)),
            ],
            out_specs=pl.BlockSpec((1, C, HW), lambda n, r: (n, 0, 0)),
        ),
        compiler_params=pltpu.CompilerParams(
            dimension_semantics=("parallel", "arbitrary"),
            vmem_limit_bytes=_vmem_limit_bytes()),
    )(x, w_stack, b_stack)


# ---------------------------------------------------------------------------
# Host-side weight re-layout helpers
# ---------------------------------------------------------------------------
def _prep_conv_weight(w):
    """(Cout, Cin, K, K) OIHW -> (K, Cout, K*Cin) bf16.

    Row ky is the (Cout, K*Cin) matmul weight for tap-row ky; columns are
    kx-major / cin-minor, matching the in-kernel concat of dx-rolled pieces.
    """
    cout, cin, k, _ = w.shape
    return (jnp.transpose(w, (2, 0, 3, 1))
            .reshape(k, cout, k * cin)
            .astype(jnp.bfloat16))


def _expand_stride2_weight(w):
    """(Cout, Cin, 4, 4) stride-2 pad-1 weights -> equivalent (Cout, 4*Cin, 3, 3)
    stride-1 pad-1 weights acting on the space-to-depth(2) input."""
    cout, cin = w.shape[:2]
    w6 = jnp.zeros((cout, cin, 2, 2, 3, 3), w.dtype)
    for a in range(3):
        for i in range(2):
            ky = 2 * a + i - 1
            if not 0 <= ky < 4:
                continue
            for bcol in range(3):
                for j in range(2):
                    kx = 2 * bcol + j - 1
                    if not 0 <= kx < 4:
                        continue
                    w6 = w6.at[:, :, i, j, a, bcol].set(w[:, :, ky, kx])
    return w6.reshape(cout, cin * 4, 3, 3)


def _space_to_depth(x):
    """(N, C, H, W) -> (N, 4C, H/2, W/2); channel order c*4 + i*2 + j."""
    n, c, h, w = x.shape
    x = x.reshape(n, c, h // 2, 2, w // 2, 2)
    x = jnp.transpose(x, (0, 1, 3, 5, 2, 4))
    return x.reshape(n, 4 * c, h // 2, w // 2)


# ---------------------------------------------------------------------------
# Parameters, forward pass, reference
# ---------------------------------------------------------------------------
def init_params(key, input_dim, dim, n_downsample, n_res):
    """Deterministic Conv2d-default-scale params in PyTorch OIHW layout."""
    def conv_init(k, cout, cin, ksz):
        kw, kb = jax.random.split(k)
        bound = 1.0 / math.sqrt(cin * ksz * ksz)
        w = jax.random.uniform(kw, (cout, cin, ksz, ksz), jnp.float32,
                               -bound, bound)
        b = jax.random.uniform(kb, (cout,), jnp.float32, -bound, bound)
        return w, b

    keys = jax.random.split(key, 1 + n_downsample + 2 * n_res)
    raw = {'wd': [], 'bd': [], 'res': []}
    raw['w0'], raw['b0'] = conv_init(keys[0], dim, input_dim, 7)
    c = dim
    for i in range(n_downsample):
        w, b = conv_init(keys[1 + i], 2 * c, c, 4)
        raw['wd'].append(w)
        raw['bd'].append(b)
        c *= 2
    for r in range(n_res):
        w1, b1 = conv_init(keys[1 + n_downsample + 2 * r], c, c, 3)
        w2, b2 = conv_init(keys[1 + n_downsample + 2 * r + 1], c, c, 3)
        raw['res'].append((w1, b1, w2, b2))
    return raw


def prep_params(raw):
    """Rewrites PyTorch-layout weights into the kernel layouts (bf16)."""
    _roll_matches_jnp()        # warm the probe outside of any jit trace
    cin = raw['w0'].shape[1]
    pad_c = (-cin) % 8         # 8-sublane alignment for each dx piece
    w0 = raw['w0']
    if pad_c:
        w0 = jnp.pad(w0, ((0, 0), (0, pad_c), (0, 0), (0, 0)))
    p = {
        'w0': _prep_conv_weight(w0),
        'b0': raw['b0'].reshape(-1, 1),
        'wd': [_prep_conv_weight(_expand_stride2_weight(w))
               for w in raw['wd']],
        'bd': [b.reshape(-1, 1) for b in raw['bd']],
    }
    if raw['res']:
        p['w_res'] = jnp.stack(
            [jnp.stack([_prep_conv_weight(w1), _prep_conv_weight(w2)])
             for (w1, _, w2, _) in raw['res']])
        p['b_res'] = jnp.stack(
            [jnp.stack([b1.reshape(-1, 1), b2.reshape(-1, 1)])
             for (_, b1, _, b2) in raw['res']])
    return p


def content_encoder_forward(x, p, *, dim, n_downsample, n_res):
    """x: (N, input_dim, H, W) f32 NCHW -> (N, dim*2**n_downsample, H', W')."""
    n, cin, h, w = x.shape
    pad_c = (-cin) % 8
    if pad_c:  # zero channels; matching zero weight columns in p['w0']
        x = jnp.pad(x, ((0, 0), (0, pad_c), (0, 0), (0, 0)))
    hflat = x.reshape(n, cin + pad_c, h * w)

    # 7x7 / stride 1 / pad 3 conv block
    hflat = _conv_block_call(hflat, p['w0'], p['b0'], K=7, H=h, W=w)
    c = dim
    # 4x4 / stride 2 / pad 1 conv blocks, as space-to-depth + 3x3 stride-1
    for i in range(n_downsample):
        hs = _space_to_depth(hflat.reshape(n, c, h, w))
        h, w = h // 2, w // 2
        hflat = hs.reshape(n, 4 * c, h * w)
        hflat = _conv_block_call(hflat, p['wd'][i], p['bd'][i], K=3, H=h, W=w)
        c *= 2
    # ResBlocks on a (batch, resblock) grid; activation stays resident in VMEM
    if n_res:
        hflat = _resblocks_call(hflat, p['w_res'], p['b_res'], H=h, W=w)
    return hflat.reshape(n, c, h, w)


def content_encoder_reference(x, raw):
    """Pure-JAX/XLA reference matching the PyTorch ContentEncoder forward."""
    def conv_block(t, w, b, stride, pad):
        y = lax.conv_general_dilated(
            t, w, window_strides=(stride, stride),
            padding=((pad, pad), (pad, pad)),
            dimension_numbers=('NCHW', 'OIHW', 'NCHW'),
            precision=lax.Precision.HIGHEST)
        y = y + b[None, :, None, None]
        return jax.nn.leaky_relu(y, negative_slope=0.2)  # hardcoded in module

    t = conv_block(x, raw['w0'], raw['b0'], 1, 3)
    for w, b in zip(raw['wd'], raw['bd']):
        t = conv_block(t, w, b, 2, 1)
    for (w1, b1, w2, b2) in raw['res']:
        y = conv_block(t, w1, b1, 1, 1)
        y = conv_block(y, w2, b2, 1, 1)
        t = t + y
    return t


if __name__ == "__main__":
    # Small ContentEncoder: input_dim=3, dim=8, n_downsample=2, n_res=2.
    # H = W = 64 keeps the flattened spatial (lane) dim a multiple of 128 at
    # every stage: 4096 -> 1024 -> 256.
    N, IN_DIM, H, W = 2, 3, 64, 64
    DIM, N_DOWN, N_RES = 8, 2, 2

    key = jax.random.PRNGKey(0)
    k_x, k_p = jax.random.split(key)
    x = jax.random.normal(k_x, (N, IN_DIM, H, W), dtype=jnp.float32)
    raw = init_params(k_p, IN_DIM, DIM, N_DOWN, N_RES)
    prepped = prep_params(raw)

    fwd = jax.jit(functools.partial(
        content_encoder_forward, dim=DIM, n_downsample=N_DOWN, n_res=N_RES))
    out = jax.block_until_ready(fwd(x, prepped))
    ref = jax.block_until_ready(content_encoder_reference(x, raw))

    out_c = DIM * 2 ** N_DOWN
    assert out.shape == (N, out_c, H // 2 ** N_DOWN, W // 2 ** N_DOWN), out.shape
    assert ref.shape == out.shape, ref.shape
    max_err = float(jnp.max(jnp.abs(out - ref)))
    # bf16 MXU operands (f32 accumulation) => looser tolerance than pure f32.
    assert jnp.allclose(out, ref, rtol=2e-2, atol=2e-2), max_err
    print("KERNEL_OK")
</pallas_src>

<mosaic_0001>
module attributes {stable_mosaic.version = 11 : i64} {
  func.func @kernel(%arg0: memref<8x128xi32, #tpu.memory_space<vmem>>, %arg1: memref<8x128xi32, #tpu.memory_space<vmem>>) attributes {dimension_semantics = [], scalar_prefetch = 0 : i64, scratch_operands = 0 : i64, tpu.core_type = #tpu.core_type<tc>} {
    %c0 = arith.constant 0 : index
    %c0_0 = arith.constant 0 : index
    %0 = vector.load %arg0[%c0, %c0_0] : memref<8x128xi32, #tpu.memory_space<vmem>>, vector<8x128xi32>
    %c1_i32 = arith.constant 1 : i32
    %1 = tpu.dynamic_rotate %0 by %c1_i32 dim 1 : vector<8x128xi32>, i32 -> vector<8x128xi32>
    %c0_1 = arith.constant 0 : index
    %c0_2 = arith.constant 0 : index
    %2 = vector.load %arg1[%c0_1, %c0_2] : memref<8x128xi32, #tpu.memory_space<vmem>>, vector<8x128xi32>
    tpu.vector_store %arg1[%c0_1, %c0_2], %1 {strides = array<i32>} : memref<8x128xi32, #tpu.memory_space<vmem>>, vector<8x128xi32>,
    return
  }
}

</mosaic_0001>

<llo_original>
// kernel: tpu_custom_call.1
$region0: #{tpu_custom_call.1}
  #allocation0 [shape = 'u32[]', space=smem, size = 0x4, offset = 0x4, fixed_abs, tag = 'smem constant byte address 0x4 - core index']
  #allocation1 [shape = 'u32[72,128]{1,0:T(1,128)}', space=vmem, size = 0x9000, scoped, tag = 'internal scratch']
  %s0 = inlined_call_operand.hbm [shape: s32[8,128], index: 0, kind: input, shape index: {}]
  %s1 = inlined_call_operand.hbm [shape: s32[8,128], index: 1, kind: output, shape index: {}]
  %s2 = sld [smem:[#allocation0]]
  $region18: #{tpu_custom_call.1} parent=0
    _
  %s4 = ssub.s32 1, %s2
  %s5 = scalar_select 0, %s4, %s2
  $region1: #{tpu_custom_call.1} parent=0
    #allocation2 [shape = 'u8[4096]{0}', space=vmem, size = 0x1000, scoped, tag = 'input window, operand 0, single buffered']
    #allocation3 [shape = 's32[1]{0}', space=sflag, size = 0x4, scoped, tag = 'scoped memory for tpu_custom_call.1']
    #allocation4 [shape = 's32[1]{0}', space=sflag, size = 0x4, scoped, tag = 'scoped memory for tpu_custom_call.1']
    #allocation5 [shape = 'u8[4096]{0}', space=vmem, size = 0x1000, scoped, tag = 'output window, operand 0, single buffered']
    %6 = vsyncpa [#allocation3], 0
    %7 = vsyncpa [#allocation4], 0
    // Predicated region
    $region2: #{tpu_custom_call.1} parent=1 // pred_check
      _
    $region3: #{tpu_custom_call.1} parent=1 // pred_check_branch
      %9 = sbr.rel (0) target = $region5
    $region4: #{tpu_custom_call.1} parent=1 // pred_region
      %11 = vsyncadd [#allocation3], 0
      %s13 = sshll.u32 %s0, 4
      %s14 = int_to_ptr.hbm [resolvable:$true] %s13
      %s15 = sshll.u32 [#allocation2], 4
      %s16 = int_to_ptr.vmem [resolvable:$true] %s15
      %18 = dma.hbm_to_vmem [thread:$0]  %s14, 128, %s16, [#allocation3]
    $region5: #{tpu_custom_call.1} parent=1 // pred_fallthru
      _
    // Predicated region
    $region6: #{tpu_custom_call.1} parent=1 // pred_check
      _
    $region7: #{tpu_custom_call.1} parent=1 // pred_check_branch
      %20 = sbr.rel (0) target = $region9
    $region8: #{tpu_custom_call.1} parent=1 // pred_region
      %22 = dma.done [#allocation3], 128
    $region9: #{tpu_custom_call.1} parent=1 // pred_fallthru
      _
    %v23 = vld [vmem:[#allocation2] sm:$0xff]
    %24 = vrot.lane.b32.xlu0 %v23, 1
    %v25 = vpop.permute.xlu0 %24
    %26 = vst [vmem:[#allocation5] sm:$0xff] %v25
    // Predicated region
    $region10: #{tpu_custom_call.1} parent=1 // pred_check
      _
    $region11: #{tpu_custom_call.1} parent=1 // pred_check_branch
      %28 = sbr.rel (0) target = $region13
    $region12: #{tpu_custom_call.1} parent=1 // pred_region
      %30 = vsyncadd [#allocation4], 0
      %s32 = sshll.u32 [#allocation5], 4
      %s33 = int_to_ptr.vmem [resolvable:$true] %s32
      %s34 = sshll.u32 %s1, 4
      %s35 = int_to_ptr.hbm [resolvable:$true] %s34
      %37 = dma.vmem_to_hbm [thread:$0]  %s33, 128, %s35, [#allocation4]
    $region13: #{tpu_custom_call.1} parent=1 // pred_fallthru
      _
    // Predicated region
    $region14: #{tpu_custom_call.1} parent=1 // pred_check
      _
    $region15: #{tpu_custom_call.1} parent=1 // pred_check_branch
      %39 = sbr.rel (0) target = $region17
    $region16: #{tpu_custom_call.1} parent=1 // pred_region
      %41 = dma.done [#allocation4], 128
    $region17: #{tpu_custom_call.1} parent=1 // pred_fallthru
      _
    %42 = vsyncpa [#allocation3], 1
    %43 = vsyncpa [#allocation4], 1

</llo_original>
